<compile_context>
chip_gen: v7x
topology: tpu7x:2x2x1
jax: 0.10.0
libtpu: 0.0.40
codegen_flags: <defaults>
</compile_context>

<pallas_src>
import functools

import jax
import jax.numpy as jnp
from jax import lax
from jax.experimental import pallas as pl
from jax.experimental.pallas import tpu as pltpu


# ----------------------------------------------------------------------------
# Fused Pallas kernel: Pad->Conv1->BN1 -> Pad->Conv2->BN2 -> ReLU -> +x
# ----------------------------------------------------------------------------
def _fused_conv_residual_kernel(x_ref, m1_ref, b1_ref, m2_ref, b2_ref,
                                out_ref, xpad_ref, hpad_ref,
                                *, H, W, Cmid, Cout,
                                KH1, KH2, dil1, dil2, pad1, pad2):
    # x_ref   : (1, H, W*Cin)   input row-slab for this batch element
    # m1_ref  : (KH1, W*Cin,  W*Cmid)  banded conv1 weights (BN1 scale folded in)
    # b1_ref  : (1, W*Cmid)            BN1 bias (channel-tiled)
    # m2_ref  : (KH2, W*Cmid, W*Cout)  banded conv2 weights (BN2 scale folded in)
    # b2_ref  : (1, W*Cout)            BN2 bias (channel-tiled)
    # out_ref : (1, H, W*Cout)
    # xpad_ref: (H+2*pad1, W*Cin)   VMEM scratch (H-halo rows zero-padded)
    # hpad_ref: (H+2*pad2, W*Cmid)  VMEM scratch for the intermediate activation

    # ---- in-kernel zero padding of the input (no jnp.pad in the wrapper) ----
    xpad_ref[...] = jnp.zeros_like(xpad_ref)
    xpad_ref[pad1:pad1 + H, :] = x_ref[0]

    # ---- repeat 0: Conv1 (+ folded BN1 scale) as KH1 banded matmuls ----
    acc1 = jnp.zeros((H, W * Cmid), jnp.float32)
    for kh in range(KH1):
        acc1 = acc1 + jnp.dot(xpad_ref[kh * dil1:kh * dil1 + H, :],
                              m1_ref[kh],
                              preferred_element_type=jnp.float32)
    h1 = acc1 + b1_ref[...]                      # BN1 bias (broadcast over rows)

    # ---- intermediate stays in VMEM; zero-pad its H halo for conv2 ----
    hpad_ref[...] = jnp.zeros_like(hpad_ref)
    hpad_ref[pad2:pad2 + H, :] = h1

    # ---- repeat 1: Conv2 (+ folded BN2 scale) as KH2 banded matmuls ----
    acc2 = jnp.zeros((H, W * Cout), jnp.float32)
    for kh in range(KH2):
        acc2 = acc2 + jnp.dot(hpad_ref[kh * dil2:kh * dil2 + H, :],
                              m2_ref[kh],
                              preferred_element_type=jnp.float32)
    y = acc2 + b2_ref[...]                       # BN2 bias

    # ---- ReLU + residual add (f32 epilogue), lane-wide store ----
    out_ref[0] = x_ref[0] + jnp.maximum(y, 0.0)


# ----------------------------------------------------------------------------
# Parameter folding: BN scale into banded per-row conv matrices (done ONCE)
# ----------------------------------------------------------------------------
def _band_matrices(w_hwio, scale, W, dilation):
    """Lower the W axis of a conv into KH banded (W*Cin, W*Cout) matrices.

    Zero-padding semantics along W are obtained by simply omitting taps that
    fall outside the image (the band is truncated at the edges).  The BN
    per-channel scale is folded into the output-channel axis.
    """
    KH, KW, Cin, Cout = w_hwio.shape
    pad_w = dilation * (KW - 1) // 2
    w_sc = (w_hwio.astype(jnp.float32)
            * scale.astype(jnp.float32)[None, None, None, :])
    mats = []
    for kh in range(KH):
        m = jnp.zeros((W * Cin, W * Cout), jnp.float32)
        for kw in range(KW):
            band = jnp.eye(W, W, k=pad_w - kw * dilation, dtype=jnp.float32)
            m = m + jnp.kron(band, w_sc[kh, kw])     # (W*Cin, W*Cout)
        mats.append(m)
    return jnp.stack(mats, axis=0)                   # (KH, W*Cin, W*Cout)


def prepare_params(params, *, W, dilation=(1, 1)):
    """Fold BN into the conv weights and build the banded matrices (once)."""
    Cmid = params["w1"].shape[3]
    Cout = params["w2"].shape[3]
    m1 = _band_matrices(params["w1"], params["scale1"], W, dilation[0])
    m2 = _band_matrices(params["w2"], params["scale2"], W, dilation[1])
    b1 = jnp.tile(params["bias1"].astype(jnp.float32), W).reshape(1, W * Cmid)
    b2 = jnp.tile(params["bias2"].astype(jnp.float32), W).reshape(1, W * Cout)
    return {"m1": m1, "b1": b1, "m2": m2, "b2": b2}


# ----------------------------------------------------------------------------
# Wrapper: one fused pallas_call, grid over batch
# ----------------------------------------------------------------------------
def conv_residual_block_pallas(x_nchw, prep, *, dilation=(1, 1)):
    """ConvResidualBlock forward.  x_nchw: (B, C, H, W) float32."""
    B, Cin, H, W = x_nchw.shape
    m1, b1, m2, b2 = prep["m1"], prep["b1"], prep["m2"], prep["b2"]
    KH1, KH2 = m1.shape[0], m2.shape[0]
    Cmid = m1.shape[2] // W
    Cout = m2.shape[2] // W
    dil1, dil2 = dilation
    pad1 = dil1 * (KH1 - 1) // 2
    pad2 = dil2 * (KH2 - 1) // 2

    # NCHW -> lane-flattened (B, H, W*C) row slabs, once at the module boundary.
    # TODO(synk): in a full network keep activations in this layout end-to-end
    #             and drop these boundary transposes entirely.
    x_rows = jnp.transpose(x_nchw, (0, 2, 3, 1)).astype(jnp.float32)
    x_rows = x_rows.reshape(B, H, W * Cin)          # free reshape (contiguous)

    kernel = functools.partial(
        _fused_conv_residual_kernel,
        H=H, W=W, Cmid=Cmid, Cout=Cout,
        KH1=KH1, KH2=KH2, dil1=dil1, dil2=dil2, pad1=pad1, pad2=pad2)

    flops = 2 * B * H * (KH1 * (W * Cin) * (W * Cmid)
                         + KH2 * (W * Cmid) * (W * Cout))
    bytes_accessed = 4 * (x_rows.size + B * H * W * Cout
                          + m1.size + m2.size + b1.size + b2.size)

    out_rows = pl.pallas_call(
        kernel,
        out_shape=jax.ShapeDtypeStruct((B, H, W * Cout), jnp.float32),
        grid_spec=pltpu.PrefetchScalarGridSpec(
            num_scalar_prefetch=0,
            grid=(B,),
            in_specs=[
                pl.BlockSpec((1, H, W * Cin), lambda b: (b, 0, 0)),
                pl.BlockSpec((KH1, W * Cin, W * Cmid), lambda b: (0, 0, 0)),
                pl.BlockSpec((1, W * Cmid), lambda b: (0, 0)),
                pl.BlockSpec((KH2, W * Cmid, W * Cout), lambda b: (0, 0, 0)),
                pl.BlockSpec((1, W * Cout), lambda b: (0, 0)),
            ],
            out_specs=pl.BlockSpec((1, H, W * Cout), lambda b: (b, 0, 0)),
            scratch_shapes=[
                pltpu.VMEM((H + 2 * pad1, W * Cin), jnp.float32),
                pltpu.VMEM((H + 2 * pad2, W * Cmid), jnp.float32),
            ],
        ),
        compiler_params=pltpu.CompilerParams(
            dimension_semantics=("parallel",),        # megacore sharding on v7x
            vmem_limit_bytes=32 * 1024 * 1024,        # explicit, fits v7x 64 MiB
        ),
        cost_estimate=pl.CostEstimate(flops=flops, transcendentals=0,
                                      bytes_accessed=bytes_accessed),
    )(x_rows, m1, b1, m2, b2)

    # (B, H, W*Cout) -> NCHW for the PyTorch-facing boundary.
    return jnp.transpose(out_rows.reshape(B, H, W, Cout), (0, 3, 1, 2))


# ----------------------------------------------------------------------------
# Pure-JAX reference (for correctness check)
# ----------------------------------------------------------------------------
def _conv_bn_ref(x_nhwc, w_hwio, scale, bias, dilation=1):
    KH = w_hwio.shape[0]
    pad = dilation * (KH - 1) // 2
    y = lax.conv_general_dilated(
        x_nhwc, w_hwio, window_strides=(1, 1),
        padding=((pad, pad), (pad, pad)),
        rhs_dilation=(dilation, dilation),
        dimension_numbers=("NHWC", "HWIO", "NHWC"))
    return y * scale + bias


def conv_residual_block_ref(x_nchw, params):
    x_nhwc = jnp.transpose(x_nchw, (0, 2, 3, 1)).astype(jnp.float32)
    h = _conv_bn_ref(x_nhwc, params["w1"], params["scale1"], params["bias1"])
    h = _conv_bn_ref(h, params["w2"], params["scale2"], params["bias2"])
    y = x_nhwc + jnp.maximum(h, 0.0)
    return jnp.transpose(y, (0, 3, 1, 2))


# ----------------------------------------------------------------------------
# Deterministic parameters (matches nn.Conv2d(bias=False) / nn.BatchNorm2d)
# ----------------------------------------------------------------------------
def make_params(key, in_channels, out_channels, kernel_size, eps=1e-5):
    C_in, C_out, K = in_channels, out_channels, kernel_size
    keys = jax.random.split(key, 8)

    def fold_bn(gamma, beta, mean, var):
        scale = gamma / jnp.sqrt(var + eps)
        return scale, beta - mean * scale

    # Conv weights: PyTorch layout (Cout, Cin, KH, KW) -> HWIO.
    w1_oihw = 0.1 * jax.random.normal(keys[0], (C_out, C_in, K, K), jnp.float32)
    w2_oihw = 0.1 * jax.random.normal(keys[1], (C_out, C_out, K, K), jnp.float32)
    w1 = jnp.transpose(w1_oihw, (2, 3, 1, 0))
    w2 = jnp.transpose(w2_oihw, (2, 3, 1, 0))

    # BatchNorm2d params (inference semantics, deterministic running stats).
    g1 = 1.0 + 0.1 * jax.random.normal(keys[2], (C_out,), jnp.float32)
    b1 = 0.1 * jax.random.normal(keys[3], (C_out,), jnp.float32)
    m1 = 0.05 * jax.random.normal(keys[4], (C_out,), jnp.float32)
    v1 = 0.5 + jnp.abs(jax.random.normal(keys[5], (C_out,), jnp.float32))
    g2 = 1.0 + 0.1 * jax.random.normal(keys[6], (C_out,), jnp.float32)
    b2 = 0.1 * jax.random.normal(keys[7], (C_out,), jnp.float32)
    m2 = jnp.zeros((C_out,), jnp.float32)
    v2 = jnp.ones((C_out,), jnp.float32)

    s1, bi1 = fold_bn(g1, b1, m1, v1)
    s2, bi2 = fold_bn(g2, b2, m2, v2)
    return {"w1": w1, "w2": w2, "scale1": s1, "bias1": bi1,
            "scale2": s2, "bias2": bi2}


# ----------------------------------------------------------------------------
if __name__ == "__main__":
    # ConvResidualBlock(num_repeats=2, in_channels=4, out_channels=4,
    #                   kernel_size=3, stride=1, dilation=1,
    #                   wrap_padding=False, nonlinear=ReLU)
    B, C, H, W = 2, 4, 16, 16
    key = jax.random.PRNGKey(0)
    k_x, k_p = jax.random.split(key)

    x = jax.random.normal(k_x, (B, C, H, W), jnp.float32)   # NCHW, like PyTorch
    raw_params = make_params(k_p, in_channels=C, out_channels=C, kernel_size=3)
    prep = prepare_params(raw_params, W=W)                  # fold BN, build bands (once)

    fwd = jax.jit(conv_residual_block_pallas)
    out = jax.block_until_ready(fwd(x, prep))

    ref = conv_residual_block_ref(x, raw_params)
    assert out.shape == (B, C, H, W)
    assert jnp.allclose(out, ref, atol=1e-4, rtol=1e-4), "mismatch vs reference"

    print("KERNEL_OK")
</pallas_src>

<mosaic_0001>
module attributes {stable_mosaic.version = 11 : i64} {
  func.func @_fused_conv_residual_kernel(%arg0: i32, %arg1: memref<1x16x64xf32, #tpu.memory_space<vmem>>, %arg2: memref<3x64x64xf32, #tpu.memory_space<vmem>>, %arg3: memref<1x64xf32, #tpu.memory_space<vmem>>, %arg4: memref<3x64x64xf32, #tpu.memory_space<vmem>>, %arg5: memref<1x64xf32, #tpu.memory_space<vmem>>, %arg6: memref<1x16x64xf32, #tpu.memory_space<vmem>>, %arg7: memref<18x64xf32, #tpu.memory_space<vmem>>, %arg8: memref<18x64xf32, #tpu.memory_space<vmem>>) attributes {dimension_semantics = [#tpu.dimension_semantics<parallel>], iteration_bounds = array<i64: 2>, scalar_prefetch = 0 : i64, scratch_operands = 2 : i64, tpu.core_type = #tpu.core_type<tc>, window_params = [{transform_indices = @transform_0, window_bounds = array<i64: 1, 16, 64>}, {pipeline_mode = #tpu.pipeline_mode<synchronous>, transform_indices = @transform_1, window_bounds = array<i64: 3, 64, 64>}, {pipeline_mode = #tpu.pipeline_mode<synchronous>, transform_indices = @transform_2, window_bounds = array<i64: 1, 64>}, {pipeline_mode = #tpu.pipeline_mode<synchronous>, transform_indices = @transform_3, window_bounds = array<i64: 3, 64, 64>}, {pipeline_mode = #tpu.pipeline_mode<synchronous>, transform_indices = @transform_4, window_bounds = array<i64: 1, 64>}, {transform_indices = @transform_5, window_bounds = array<i64: 1, 16, 64>}]} {
    %cst = arith.constant 0.000000e+00 : f32
    %0 = vector.broadcast %cst : f32 to vector<18x64xf32>
    %c0 = arith.constant 0 : index
    %c0_0 = arith.constant 0 : index
    %1 = vector.load %arg7[%c0, %c0_0] : memref<18x64xf32, #tpu.memory_space<vmem>>, vector<18x64xf32>
    tpu.vector_store %arg7[%c0, %c0_0], %0 {strides = array<i32>} : memref<18x64xf32, #tpu.memory_space<vmem>>, vector<18x64xf32>,
    %c0_1 = arith.constant 0 : index
    %c0_2 = arith.constant 0 : index
    %c0_3 = arith.constant 0 : index
    %2 = vector.load %arg1[%c0_1, %c0_2, %c0_3] : memref<1x16x64xf32, #tpu.memory_space<vmem>>, vector<1x16x64xf32>
    %3 = vector.shape_cast %2 : vector<1x16x64xf32> to vector<16x64xf32>
    %c1 = arith.constant 1 : index
    %c0_4 = arith.constant 0 : index
    %4 = vector.load %arg7[%c1, %c0_4] : memref<18x64xf32, #tpu.memory_space<vmem>>, vector<16x64xf32>
    tpu.vector_store %arg7[%c1, %c0_4], %3 {strides = array<i32>} : memref<18x64xf32, #tpu.memory_space<vmem>>, vector<16x64xf32>,
    %cst_5 = arith.constant 0.000000e+00 : f32
    %5 = vector.broadcast %cst_5 : f32 to vector<16x64xf32>
    %c0_6 = arith.constant 0 : index
    %c0_7 = arith.constant 0 : index
    %6 = vector.load %arg7[%c0_6, %c0_7] : memref<18x64xf32, #tpu.memory_space<vmem>>, vector<16x64xf32>
    %c0_8 = arith.constant 0 : index
    %c0_9 = arith.constant 0 : index
    %c0_10 = arith.constant 0 : index
    %7 = vector.load %arg2[%c0_8, %c0_9, %c0_10] : memref<3x64x64xf32, #tpu.memory_space<vmem>>, vector<1x64x64xf32>
    %8 = vector.shape_cast %7 : vector<1x64x64xf32> to vector<64x64xf32>
    %cst_11 = arith.constant dense<0.000000e+00> : vector<16x64xf32>
    %9 = tpu.matmul %6, %8, %cst_11 {dimension_numbers = #tpu.dot_dimension_numbers<[1], [0], [0], [1], [0, 0, 1, 1], [], []>} : vector<16x64xf32>, vector<64x64xf32>, vector<16x64xf32> -> vector<16x64xf32>
    %10 = arith.addf %5, %9 : vector<16x64xf32>
    %c1_12 = arith.constant 1 : index
    %c0_13 = arith.constant 0 : index
    %11 = vector.load %arg7[%c1_12, %c0_13] : memref<18x64xf32, #tpu.memory_space<vmem>>, vector<16x64xf32>
    %c1_14 = arith.constant 1 : index
    %c0_15 = arith.constant 0 : index
    %c0_16 = arith.constant 0 : index
    %12 = vector.load %arg2[%c1_14, %c0_15, %c0_16] : memref<3x64x64xf32, #tpu.memory_space<vmem>>, vector<1x64x64xf32>
    %13 = vector.shape_cast %12 : vector<1x64x64xf32> to vector<64x64xf32>
    %cst_17 = arith.constant dense<0.000000e+00> : vector<16x64xf32>
    %14 = tpu.matmul %11, %13, %cst_17 {dimension_numbers = #tpu.dot_dimension_numbers<[1], [0], [0], [1], [0, 0, 1, 1], [], []>} : vector<16x64xf32>, vector<64x64xf32>, vector<16x64xf32> -> vector<16x64xf32>
    %15 = arith.addf %10, %14 : vector<16x64xf32>
    %c2 = arith.constant 2 : index
    %c0_18 = arith.constant 0 : index
    %16 = vector.load %arg7[%c2, %c0_18] : memref<18x64xf32, #tpu.memory_space<vmem>>, vector<16x64xf32>
    %c2_19 = arith.constant 2 : index
    %c0_20 = arith.constant 0 : index
    %c0_21 = arith.constant 0 : index
    %17 = vector.load %arg2[%c2_19, %c0_20, %c0_21] : memref<3x64x64xf32, #tpu.memory_space<vmem>>, vector<1x64x64xf32>
    %18 = vector.shape_cast %17 : vector<1x64x64xf32> to vector<64x64xf32>
    %cst_22 = arith.constant dense<0.000000e+00> : vector<16x64xf32>
    %19 = tpu.matmul %16, %18, %cst_22 {dimension_numbers = #tpu.dot_dimension_numbers<[1], [0], [0], [1], [0, 0, 1, 1], [], []>} : vector<16x64xf32>, vector<64x64xf32>, vector<16x64xf32> -> vector<16x64xf32>
    %20 = arith.addf %15, %19 : vector<16x64xf32>
    %c0_23 = arith.constant 0 : index
    %c0_24 = arith.constant 0 : index
    %21 = vector.load %arg3[%c0_23, %c0_24] : memref<1x64xf32, #tpu.memory_space<vmem>>, vector<1x64xf32>
    %22 = vector.broadcast %21 : vector<1x64xf32> to vector<16x64xf32>
    %23 = arith.addf %20, %22 : vector<16x64xf32>
    %cst_25 = arith.constant 0.000000e+00 : f32
    %24 = vector.broadcast %cst_25 : f32 to vector<18x64xf32>
    %c0_26 = arith.constant 0 : index
    %c0_27 = arith.constant 0 : index
    %25 = vector.load %arg8[%c0_26, %c0_27] : memref<18x64xf32, #tpu.memory_space<vmem>>, vector<18x64xf32>
    tpu.vector_store %arg8[%c0_26, %c0_27], %24 {strides = array<i32>} : memref<18x64xf32, #tpu.memory_space<vmem>>, vector<18x64xf32>,
    %c1_28 = arith.constant 1 : index
    %c0_29 = arith.constant 0 : index
    %26 = vector.load %arg8[%c1_28, %c0_29] : memref<18x64xf32, #tpu.memory_space<vmem>>, vector<16x64xf32>
    tpu.vector_store %arg8[%c1_28, %c0_29], %23 {strides = array<i32>} : memref<18x64xf32, #tpu.memory_space<vmem>>, vector<16x64xf32>,
    %cst_30 = arith.constant 0.000000e+00 : f32
    %27 = vector.broadcast %cst_30 : f32 to vector<16x64xf32>
    %c0_31 = arith.constant 0 : index
    %c0_32 = arith.constant 0 : index
    %28 = vector.load %arg8[%c0_31, %c0_32] : memref<18x64xf32, #tpu.memory_space<vmem>>, vector<16x64xf32>
    %c0_33 = arith.constant 0 : index
    %c0_34 = arith.constant 0 : index
    %c0_35 = arith.constant 0 : index
    %29 = vector.load %arg4[%c0_33, %c0_34, %c0_35] : memref<3x64x64xf32, #tpu.memory_space<vmem>>, vector<1x64x64xf32>
    %30 = vector.shape_cast %29 : vector<1x64x64xf32> to vector<64x64xf32>
    %cst_36 = arith.constant dense<0.000000e+00> : vector<16x64xf32>
    %31 = tpu.matmul %28, %30, %cst_36 {dimension_numbers = #tpu.dot_dimension_numbers<[1], [0], [0], [1], [0, 0, 1, 1], [], []>} : vector<16x64xf32>, vector<64x64xf32>, vector<16x64xf32> -> vector<16x64xf32>
    %32 = arith.addf %27, %31 : vector<16x64xf32>
    %c1_37 = arith.constant 1 : index
    %c0_38 = arith.constant 0 : index
    %33 = vector.load %arg8[%c1_37, %c0_38] : memref<18x64xf32, #tpu.memory_space<vmem>>, vector<16x64xf32>
    %c1_39 = arith.constant 1 : index
    %c0_40 = arith.constant 0 : index
    %c0_41 = arith.constant 0 : index
    %34 = vector.load %arg4[%c1_39, %c0_40, %c0_41] : memref<3x64x64xf32, #tpu.memory_space<vmem>>, vector<1x64x64xf32>
    %35 = vector.shape_cast %34 : vector<1x64x64xf32> to vector<64x64xf32>
    %cst_42 = arith.constant dense<0.000000e+00> : vector<16x64xf32>
    %36 = tpu.matmul %33, %35, %cst_42 {dimension_numbers = #tpu.dot_dimension_numbers<[1], [0], [0], [1], [0, 0, 1, 1], [], []>} : vector<16x64xf32>, vector<64x64xf32>, vector<16x64xf32> -> vector<16x64xf32>
    %37 = arith.addf %32, %36 : vector<16x64xf32>
    %c2_43 = arith.constant 2 : index
    %c0_44 = arith.constant 0 : index
    %38 = vector.load %arg8[%c2_43, %c0_44] : memref<18x64xf32, #tpu.memory_space<vmem>>, vector<16x64xf32>
    %c2_45 = arith.constant 2 : index
    %c0_46 = arith.constant 0 : index
    %c0_47 = arith.constant 0 : index
    %39 = vector.load %arg4[%c2_45, %c0_46, %c0_47] : memref<3x64x64xf32, #tpu.memory_space<vmem>>, vector<1x64x64xf32>
    %40 = vector.shape_cast %39 : vector<1x64x64xf32> to vector<64x64xf32>
    %cst_48 = arith.constant dense<0.000000e+00> : vector<16x64xf32>
    %41 = tpu.matmul %38, %40, %cst_48 {dimension_numbers = #tpu.dot_dimension_numbers<[1], [0], [0], [1], [0, 0, 1, 1], [], []>} : vector<16x64xf32>, vector<64x64xf32>, vector<16x64xf32> -> vector<16x64xf32>
    %42 = arith.addf %37, %41 : vector<16x64xf32>
    %c0_49 = arith.constant 0 : index
    %c0_50 = arith.constant 0 : index
    %43 = vector.load %arg5[%c0_49, %c0_50] : memref<1x64xf32, #tpu.memory_space<vmem>>, vector<1x64xf32>
    %44 = vector.broadcast %43 : vector<1x64xf32> to vector<16x64xf32>
    %45 = arith.addf %42, %44 : vector<16x64xf32>
    %c0_51 = arith.constant 0 : index
    %c0_52 = arith.constant 0 : index
    %c0_53 = arith.constant 0 : index
    %46 = vector.load %arg1[%c0_51, %c0_52, %c0_53] : memref<1x16x64xf32, #tpu.memory_space<vmem>>, vector<1x16x64xf32>
    %47 = vector.shape_cast %46 : vector<1x16x64xf32> to vector<16x64xf32>
    %cst_54 = arith.constant 0.000000e+00 : f32
    %48 = vector.broadcast %cst_54 : f32 to vector<16x64xf32>
    %49 = arith.maximumf %45, %48 : vector<16x64xf32>
    %50 = arith.addf %47, %49 : vector<16x64xf32>
    %c0_55 = arith.constant 0 : index
    %c0_56 = arith.constant 0 : index
    %c0_57 = arith.constant 0 : index
    %51 = vector.load %arg6[%c0_55, %c0_56, %c0_57] : memref<1x16x64xf32, #tpu.memory_space<vmem>>, vector<1x16x64xf32>
    %52 = vector.shape_cast %51 : vector<1x16x64xf32> to vector<16x64xf32>
    %53 = vector.shape_cast %50 : vector<16x64xf32> to vector<1x16x64xf32>
    tpu.vector_store %arg6[%c0_55, %c0_56, %c0_57], %53 {strides = array<i32>} : memref<1x16x64xf32, #tpu.memory_space<vmem>>, vector<1x16x64xf32>,
    return
  }
  func.func @transform_0(%arg0: i32) -> (i32, i32, i32) {
    %c0_i32 = arith.constant 0 : i32
    %c0_i32_0 = arith.constant 0 : i32
    %c0_i32_1 = arith.constant 0 : i32
    return %arg0, %c0_i32, %c0_i32_0 : i32, i32, i32
  }
  func.func @transform_1(%arg0: i32) -> (i32, i32, i32) {
    %c0_i32 = arith.constant 0 : i32
    %c0_i32_0 = arith.constant 0 : i32
    %c0_i32_1 = arith.constant 0 : i32
    %c0_i32_2 = arith.constant 0 : i32
    return %c0_i32, %c0_i32_0, %c0_i32_1 : i32, i32, i32
  }
  func.func @transform_2(%arg0: i32) -> (i32, i32) {
    %c0_i32 = arith.constant 0 : i32
    %c0_i32_0 = arith.constant 0 : i32
    %c0_i32_1 = arith.constant 0 : i32
    return %c0_i32, %c0_i32_0 : i32, i32
  }
  func.func @transform_3(%arg0: i32) -> (i32, i32, i32) {
    %c0_i32 = arith.constant 0 : i32
    %c0_i32_0 = arith.constant 0 : i32
    %c0_i32_1 = arith.constant 0 : i32
    %c0_i32_2 = arith.constant 0 : i32
    return %c0_i32, %c0_i32_0, %c0_i32_1 : i32, i32, i32
  }
  func.func @transform_4(%arg0: i32) -> (i32, i32) {
    %c0_i32 = arith.constant 0 : i32
    %c0_i32_0 = arith.constant 0 : i32
    %c0_i32_1 = arith.constant 0 : i32
    return %c0_i32, %c0_i32_0 : i32, i32
  }
  func.func @transform_5(%arg0: i32) -> (i32, i32, i32) {
    %c0_i32 = arith.constant 0 : i32
    %c0_i32_0 = arith.constant 0 : i32
    %c0_i32_1 = arith.constant 0 : i32
    return %arg0, %c0_i32, %c0_i32_0 : i32, i32, i32
  }
}

</mosaic_0001>

<llo_original>
// kernel: conv_residual_block_pallas.1
$region0: #{conv_residual_block_pallas.1}
  #allocation0 [shape = 'u32[]', space=smem, size = 0x4, offset = 0x4, fixed_abs, tag = 'smem constant byte address 0x4 - core index']
  #allocation1 [shape = 'u32[144,128]{1,0:T(1,128)}', space=vmem, size = 0x12000, scoped, tag = 'internal scratch']
  #allocation2 [shape = 'f32[18,64]{1,0:T(8,128)}', space=vmem, size = 0x3000, scoped, tag = 'scratch operand']
  #allocation3 [shape = 'f32[18,64]{1,0:T(8,128)}', space=vmem, size = 0x3000, scoped, tag = 'scratch operand']
  %s0 = inlined_call_operand.vmem [shape: f32[2,16,64], index: 0, kind: input, shape index: {}]
  %s1 = inlined_call_operand.vmem [shape: f32[3,64,64], index: 1, kind: input, shape index: {}]
  %s2 = inlined_call_operand.vmem [shape: f32[1,64], index: 2, kind: input, shape index: {}]
  %s3 = inlined_call_operand.vmem [shape: f32[3,64,64], index: 3, kind: input, shape index: {}]
  %s4 = inlined_call_operand.vmem [shape: f32[1,64], index: 4, kind: input, shape index: {}]
  %s5 = inlined_call_operand.vmem [shape: f32[2,16,64], index: 5, kind: output, shape index: {}]
  %s6 = sld [smem:[#allocation0]]
  $region53: #{conv_residual_block_pallas.1} parent=0
    _
  %s8 = ssub.s32 1, %s6
  %s9 = scalar_select 0, %s8, %s6
  loop: start=0, step=1, limit=4
  $region2: #{conv_residual_block_pallas.1} parent=0 // loop_pre_header
    _
  $region3: #{conv_residual_block_pallas.1} parent=0 // loop_header
    %s11 = sphi 0, %s15
    %p12 = scmp.ge.s32.totalorder %s11, 4
    %s21 = sphi 0, %s23
    %s24 = sphi 0, %s21
    %s25 = sphi 0, %s24
    %s41 = sphi 0, %s25
    %s45 = sphi 0, %s45
    %s47 = sphi 0, %s45
    %s48 = sphi 0, %s47
    %s62 = sphi 0, %s48
    %s66 = sphi 0, %s66
    %s68 = sphi 0, %s66
    %s69 = sphi 0, %s68
    %s83 = sphi 0, %s69
    %s87 = sphi 0, %s87
    %s89 = sphi 0, %s87
    %s90 = sphi 0, %s89
    %s104 = sphi 0, %s90
    %s108 = sphi 0, %s108
    %s110 = sphi 0, %s108
    %s111 = sphi 0, %s110
    %s125 = sphi 0, %s111
    %s131 = sphi 0, %s133
    %s134 = sphi 0, %s131
    %s135 = sphi 0, %s134
    %s151 = sphi 0, %s135
  $region4: #{conv_residual_block_pallas.1} parent=0 // loop_header_branch
    %14 = sbr.rel (%p12) target = $region8
  $region5: #{conv_residual_block_pallas.1} parent=0 // loop_body
    %s16 = ssub.s32 %s11, 1
    %s17 = ssub.s32 %s11, 2
    %s18 = sadd.s32 %s11, 1
    %s19 = ssub.s32 %s11, %s18
    %p20 = scmp.eq.s32.totalorder %s19, 0
    %s22 = sadd.s32 %s21, 1
    %s23 = scalar_select %p20, %s21, %s22
    %p26 = pneg %p20
    %p27 = scmp.eq.s32.totalorder %s11, 1
    %p28 = por %p26, %p27
    %p29 = scmp.ne.s32.totalorder %s21, %s24
    %p30 = scmp.eq.s32.totalorder %s11, 0
    %p31 = por %p29, %p30
    %p32 = scmp.ne.s32.totalorder %s21, %s24
    %p33 = scmp.eq.s32.totalorder %s16, 1
    %p34 = por %p32, %p33
    %p35 = scmp.ne.s32.totalorder %s24, %s25
    %p36 = scmp.eq.s32.totalorder %s16, 0
    %p37 = por %p35, %p36
    %p38 = scmp.ne.s32.totalorder %s24, %s25
    %p39 = scmp.eq.s32.totalorder %s17, 1
    %p40 = por %p38, %p39
    %p42 = scmp.ne.s32.totalorder %s25, %s41
    %p43 = scmp.eq.s32.totalorder %s17, 0
    %p44 = por %p42, %p43
    %s46 = sadd.s32 %s45, 1
    %p49 = scmp.eq.s32.totalorder %s11, 1
    %p50 = scmp.ne.s32.totalorder %s45, %s47
    %p51 = scmp.eq.s32.totalorder %s11, 0
    %p52 = por %p50, %p51
    %p53 = scmp.ne.s32.totalorder %s45, %s47
    %p54 = scmp.eq.s32.totalorder %s16, 1
    %p55 = por %p53, %p54
    %p56 = scmp.ne.s32.totalorder %s47, %s48
    %p57 = scmp.eq.s32.totalorder %s16, 0
    %p58 = por %p56, %p57
    %p59 = scmp.ne.s32.totalorder %s47, %s48
    %p60 = scmp.eq.s32.totalorder %s17, 1
    %p61 = por %p59, %p60
    %p63 = scmp.ne.s32.totalorder %s48, %s62
    %p64 = scmp.eq.s32.totalorder %s17, 0
    %p65 = por %p63, %p64
    %s67 = sadd.s32 %s66, 1
    %p70 = scmp.eq.s32.totalorder %s11, 1
    %p71 = scmp.ne.s32.totalorder %s66, %s68
    %p72 = scmp.eq.s32.totalorder %s11, 0
    %p73 = por %p71, %p72
    %p74 = scmp.ne.s32.totalorder %s66, %s68
    %p75 = scmp.eq.s32.totalorder %s16, 1
    %p76 = por %p74, %p75
    %p77 = scmp.ne.s32.totalorder %s68, %s69
    %p78 = scmp.eq.s32.totalorder %s16, 0
    %p79 = por %p77, %p78
    %p80 = scmp.ne.s32.totalorder %s68, %s69
    %p81 = scmp.eq.s32.totalorder %s17, 1
    %p82 = por %p80, %p81
    %p84 = scmp.ne.s32.totalorder %s69, %s83
    %p85 = scmp.eq.s32.totalorder %s17, 0
    %p86 = por %p84, %p85
    %s88 = sadd.s32 %s87, 1
    %p91 = scmp.eq.s32.totalorder %s11, 1
    %p92 = scmp.ne.s32.totalorder %s87, %s89
    %p93 = scmp.eq.s32.totalorder %s11, 0
    %p94 = por %p92, %p93
    %p95 = scmp.ne.s32.totalorder %s87, %s89
    %p96 = scmp.eq.s32.totalorder %s16, 1
    %p97 = por %p95, %p96
    %p98 = scmp.ne.s32.totalorder %s89, %s90
    %p99 = scmp.eq.s32.totalorder %s16, 0
    %p100 = por %p98, %p99
    %p101 = scmp.ne.s32.totalorder %s89, %s90
    %p102 = scmp.eq.s32.totalorder %s17, 1
    %p103 = por %p101, %p102
    %p105 = scmp.ne.s32.totalorder %s90, %s104
    %p106 = scmp.eq.s32.totalorder %s17, 0
    %p107 = por %p105, %p106
    %s109 = sadd.s32 %s108, 1
    %p112 = scmp.eq.s32.totalorder %s11, 1
    %p113 = scmp.ne.s32.totalorder %s108, %s110
    %p114 = scmp.eq.s32.totalorder %s11, 0
    %p115 = por %p113, %p114
    %p116 = scmp.ne.s32.totalorder %s108, %s110
    %p117 = scmp.eq.s32.totalorder %s16, 1
    %p118 = por %p116, %p117
    %p119 = scmp.ne.s32.totalorder %s110, %s111
    %p120 = scmp.eq.s32.totalorder %s16, 0
    %p121 = por %p119, %p120
    %p122 = scmp.ne.s32.totalorder %s110, %s111
    %p123 = scmp.eq.s32.totalorder %s17, 1
    %p124 = por %p122, %p123
    %p126 = scmp.ne.s32.totalorder %s111, %s125
    %p127 = scmp.eq.s32.totalorder %s17, 0
    %p128 = por %p126, %p127
    %s129 = ssub.s32 %s11, %s18
    %p130 = scmp.eq.s32.totalorder %s129, 0
    %s132 = sadd.s32 %s131, 1
    %s133 = scalar_select %p130, %s131, %s132
    %p136 = pneg %p130
    %p137 = scmp.eq.s32.totalorder %s11, 1
    %p138 = por %p136, %p137
    %p139 = scmp.ne.s32.totalorder %s131, %s134
    %p140 = scmp.eq.s32.totalorder %s11, 0
    %p141 = por %p139, %p140
    %p142 = scmp.ne.s32.totalorder %s131, %s134
    %p143 = scmp.eq.s32.totalorder %s16, 1
    %p144 = por %p142, %p143
    %p145 = scmp.ne.s32.totalorder %s134, %s135
    %p146 = scmp.eq.s32.totalorder %s16, 0
    %p147 = por %p145, %p146
    %p148 = scmp.ne.s32.totalorder %s134, %s135
    %p149 = scmp.eq.s32.totalorder %s17, 1
    %p150 = por %p148, %p149
    %p152 = scmp.ne.s32.totalorder %s135, %s151
    %p153 = scmp.eq.s32.totalorder %s17, 0
    %p154 = por %p152, %p153
    %p155 = scmp.le.s32.totalorder 1, %s11
    %p156 = scmp.lt.s32.totalorder %s11, 3
    %p157 = pnand %p155, %p156
    %p158 = pneg %p157
    // Predicated region
    $region9: #{conv_residual_block_pallas.1} parent=5 // pred_check
      _
    $region10: #{conv_residual_block_pallas.1} parent=5 // pred_check_branch
      %160 = sbr.rel (%p157) target = $region12
    $region11: #{conv_residual_block_pallas.1} parent=5 // pred_region
      %s161 = ssub.s32 %s11, 1
      // Predicated region
      $region13: #{conv_residual_block_pallas.1} parent=11 // pred_check
        %p162 = pneg %p58
      $region14: #{conv_residual_block_pallas.1} parent=11 // pred_check_branch
        %164 = sbr.rel (%p162) target = $region16
      $region15: #{conv_residual_block_pallas.1} parent=11 // pred_region
        _
      $region16: #{conv_residual_block_pallas.1} parent=11 // pred_fallthru
        _
      // Predicated region
      $region17: #{conv_residual_block_pallas.1} parent=11 // pred_check
        %p165 = pneg %p79
      $region18: #{conv_residual_block_pallas.1} parent=11 // pred_check_branch
        %167 = sbr.rel (%p165) target = $region20
      $region19: #{conv_residual_block_pallas.1} parent=11 // pred_region
        _
      $region20: #{conv_residual_block_pallas.1} parent=11 // pred_fallthru
        _
      // Predicated region
      $region21: #{conv_residual_block_pallas.1} parent=11 // pred_check
        %p168 = pneg %p100
      $region22: #{conv_residual_block_pallas.1} parent=11 // pred_check_branch
        %170 = sbr.rel (%p168) target = $region24
      $region23: #{conv_residual_block_pallas.1} parent=11 // pred_region
        _
      $region24: #{conv_residual_block_pallas.1} parent=11 // pred_fallthru
        _
      // Predicated region
      $region25: #{conv_residual_block_pallas.1} parent=11 // pred_check
        %p171 = pneg %p121
      $region26: #{conv_residual_block_pallas.1} parent=11 // pred_check_branch
        %173 = sbr.rel (%p171) target = $region28
      $region27: #{conv_residual_block_pallas.1} parent=11 // pred_region
        _
      $region28: #{conv_residual_block_pallas.1} parent=11 // pred_fallthru
        _
    $region12: #{conv_residual_block_pallas.1} parent=5 // pred_fallthru
      _
    %p174 = scmp.lt.s32.totalorder %s11, 2
    // Predicated region
    $region29: #{conv_residual_block_pallas.1} parent=5 // pred_check
      %p175 = pneg %p174
    $region30: #{conv_residual_block_pallas.1} parent=5 // pred_check_branch
      %177 = sbr.rel (%p175) target = $region32
    $region31: #{conv_residual_block_pallas.1} parent=5 // pred_region
      // Predicated region
      $region33: #{conv_residual_block_pallas.1} parent=31 // pred_check
        %p178 = pneg %p31
      $region34: #{conv_residual_block_pallas.1} parent=31 // pred_check_branch
        %180 = sbr.rel (%p178) target = $region36
      $region35: #{conv_residual_block_pallas.1} parent=31 // pred_region
        %p181 = scmp.lt.s32.totalorder %s11, 1
        %s182 = scalar_select %p181, %s11, 1
        %s183 = smul.addr %s182, 2
        %s184 = smul.addr %s183, 8
        %s185 = scalar_lea.vmem %s0, %s184
      $region36: #{conv_residual_block_pallas.1} parent=31 // pred_fallthru
        _
    $region32: #{conv_residual_block_pallas.1} parent=5 // pred_fallthru
      _
    %p186 = scmp.le.s32.totalorder 1, %s11
    %p187 = scmp.lt.s32.totalorder %s11, 3
    %p188 = pnand %p186, %p187
    %p189 = pneg %p188
    // Predicated region
    $region37: #{conv_residual_block_pallas.1} parent=5 // pred_check
      _
    $region38: #{conv_residual_block_pallas.1} parent=5 // pred_check_branch
      %191 = sbr.rel (%p188) target = $region40
    $region39: #{conv_residual_block_pallas.1} parent=5 // pred_region
      %s192 = ssub.s32 %s11, 1
      %p193 = scmp.lt.s32.totalorder %s16, 1
      %s194 = scalar_select %p193, %s16, 1
      %s195 = smul.addr %s194, 2
      %s196 = smul.addr %s195, 8
      %s197 = scalar_lea.vmem %s0, %s196
      %p198 = pneg %p37
      %p199 = pneg %p34
      %p200 = pneg %p58
      %p201 = pneg %p55
      %p202 = pneg %p79
      %p203 = pneg %p76
      %p204 = pneg %p100
      %p205 = pneg %p97
      %p206 = pneg %p121
      %p207 = pneg %p118
      %p208 = pneg %p147
      %p209 = pneg %p144
      %p210 = scmp.lt.s32.totalorder %s16, 1
      %s211 = scalar_select %p210, %s16, 1
      %s212 = smul.addr %s211, 2
      %s213 = smul.addr %s212, 8
      %s214 = scalar_lea.vmem %s5, %s213
      %p215 = scmp.lt.s32.totalorder %s16, 1
      %s216 = scalar_select %p215, %s16, 1
      %s217 = smul.addr %s216, 2
      %s218 = smul.addr %s217, 8
      %s219 = scalar_lea.vmem %s0, %s218
      %p220 = scmp.lt.s32.totalorder %s16, 1
      %s221 = scalar_select %p220, %s16, 1
      %s222 = smul.addr %s221, 2
      %s223 = smul.addr %s222, 8
      %s224 = scalar_lea.vmem %s5, %s223
      %vm225 = vcmask 523264
      %226 = vst.msk [vmem:[#allocation2] sm:$0xff] %vm225, 0.0
      %227 = vst.msk [vmem:[#allocation2 + $0x8] sm:$0xff] %vm225, 0.0
      %vm228 = vcmask 517120
      %229 = vst.msk [vmem:[#allocation2 + $0x10] sm:$0x3] %vm228, 0.0
      %v230 = vld [vmem:[%s219] sm:$0xff]
      %v231 = vld [vmem:[%s219 + $0x8] sm:$0xff]
      %232 = vst.msk [vmem:[#allocation2 + $0x1] sm:$0xff] %vm225, %v230
      %233 = vst.msk [vmem:[#allocation2 + $0x9] sm:$0xff] %vm225, %v231
      %v234 = vld [vmem:[#allocation2] sm:$0xff]
      %v235 = vld [vmem:[#allocation2 + $0x8] sm:$0xff]
      %v236 = vld [vmem:[%s1] sm:$0xff]
      %v237 = vld [vmem:[%s1 + $0x8] sm:$0xff]
      %v238 = vld [vmem:[%s1 + $0x10] sm:$0xff]
      %v239 = vld [vmem:[%s1 + $0x18] sm:$0xff]
      %v240 = vld [vmem:[%s1 + $0x20] sm:$0xff]
      %v241 = vld [vmem:[%s1 + $0x28] sm:$0xff]
      %v242 = vld [vmem:[%s1 + $0x30] sm:$0xff]
      %v243 = vld [vmem:[%s1 + $0x38] sm:$0xff]
      %v244 = vld [vmem:[#allocation2 + $0x1] sm:$0xff]
      %v245 = vld [vmem:[#allocation2 + $0x9] sm:$0xff]
      %s246 = scalar_lea.vmem %s1, 64
      %v247 = vld [vmem:[%s246] sm:$0xff]
      %v248 = vld [vmem:[%s246 + $0x8] sm:$0xff]
      %v249 = vld [vmem:[%s246 + $0x10] sm:$0xff]
      %v250 = vld [vmem:[%s246 + $0x18] sm:$0xff]
      %v251 = vld [vmem:[%s246 + $0x20] sm:$0xff]
      %v252 = vld [vmem:[%s246 + $0x28] sm:$0xff]
      %v253 = vld [vmem:[%s246 + $0x30] sm:$0xff]
      %v254 = vld [vmem:[%s246 + $0x38] sm:$0xff]
      %v256 = vsel %vm225, %v244, 0
      %v259 = vsel %vm225, %v245, 0
      %261 = vmatprep.subr.mxu0 0.0
      %262 = vmatpush1.msra.mxu0 %v247
      %263 = vmatprep.subr.mxu0 0.0
      %264 = vmatpush1.msra.mxu0 %v248
      %265 = vmatprep.subr.mxu0 0.0
      %266 = vmatpush1.msra.mxu0 %v249
      %267 = vmatprep.subr.mxu0 0.0
      %268 = vmatpush1.msra.mxu0 %v250
      %269 = vmatprep.subr.mxu0 0.0
      %270 = vmatpush1.msra.mxu0 %v251
      %271 = vmatprep.subr.mxu0 0.0
      %272 = vmatpush1.msra.mxu0 %v252
      %273 = vmatprep.subr.mxu0 0.0
      %274 = vmatpush1.msra.mxu0 %v253
      %275 = vmatprep.subr.mxu0 0.0
      %276 = vmatpush1.msra.mxu0 %v254
      %277 = vmatprep.subr.mxu0 0.0
      %278 = vmatpush1.msra.mxu0 0.0
      %279 = vmatprep.subr.mxu0 0.0
      %280 = vmatpush1.msra.mxu0 0.0
      %281 = vmatprep.subr.mxu0 0.0
      %282 = vmatpush1.msra.mxu0 0.0
      %283 = vmatprep.subr.mxu0 0.0
      %284 = vmatpush1.msra.mxu0 0.0
      %285 = vmatprep.subr.mxu0 0.0
      %286 = vmatpush1.msra.mxu0 0.0
      %287 = vmatprep.subr.mxu0 0.0
      %288 = vmatpush1.msra.mxu0 0.0
      %289 = vmatprep.subr.mxu0 0.0
      %290 = vmatpush1.msra.mxu0 0.0
      %291 = vmatprep.subr.mxu0 0.0
      %292 = vmatpush1.msra.mxu0 0.0
      %293 = vmatprep.subr.mxu0 0.0
      %294 = vmatpush1.msra.mxu0 0.0
      %295 = vmatprep.subr.mxu0 0.0
      %296 = vmatpush1.msra.mxu0 0.0
      %297 = vmatprep.subr.mxu0 0.0
      %298 = vmatpush1.msra.mxu0 0.0
      %299 = vmatprep.subr.mxu0 0.0
      %300 = vmatpush1.msra.mxu0 0.0
      %301 = vmatprep.subr.mxu0 0.0
      %302 = vmatpush1.msra.mxu0 0.0
      %303 = vmatprep.subr.mxu0 0.0
      %304 = vmatpush1.msra.mxu0 0.0
      %305 = vmatprep.subr.mxu0 0.0
      %306 = vmatpush1.msra.mxu0 0.0
      %307 = vmatprep.subr.mxu0 0.0
      %308 = vmatpush1.msra.mxu0 0.0
      %309 = vmatprep.subr.mxu0 0.0
      %310 = vmatpush1.msra.mxu0 0.0
      %311 = vmatprep.subr.mxu0 0.0
      %312 = vmatpush1.msra.mxu0 0.0
      %313 = vmatprep.subr.mxu0 0.0
      %314 = vmatpush1.msra.mxu0 0.0
      %315 = vmatprep.subr.mxu0 0.0
      %316 = vmatpush1.msra.mxu0 0.0
      %317 = vmatprep.subr.mxu0 0.0
      %318 = vmatpush1.msra.mxu0 0.0
      %319 = vmatprep.subr.mxu0 0.0
      %320 = vmatpush1.msra.mxu0 0.0
      %321 = vmatprep.subr.mxu0 0.0
      %322 = vmatpush1.msra.mxu0 0.0
      %323 = vmatprep.subr.mxu0 0.0
      %324 = vmatpush1.msra.mxu0 0.0
      %325 = vmatprep.mubr.f32.mxu0 0.0
      %326 = vmatmul.mubr.f32.gmra.mrb[0].mxu0 %v256
      %v327 = vpop.f32.mrb[0].mxu0
      %v328 = vadd.f32 0.0, %v327
      %v329 = vpop.f32.mrb[0].mxu0
      %330 = vmatprep.mubr.f32.mxu0 0.0
      %331 = vmatmul.mubr.f32.gmra.mrb[0].mxu0 %v259
      %v332 = vpop.f32.mrb[0].mxu0
      %v333 = vadd.f32 0.0, %v332
      %v334 = vpop.f32.mrb[0].mxu0
      %335 = vdwg.mxu0
      %v337 = vsel %vm225, %v234, 0
      %v340 = vsel %vm225, %v235, 0
      %342 = vmatprep.subr.mxu0 0.0
      %343 = vmatpush1.msra.mxu0 %v236
      %344 = vmatprep.subr.mxu0 0.0
      %345 = vmatpush1.msra.mxu0 %v237
      %346 = vmatprep.subr.mxu0 0.0
      %347 = vmatpush1.msra.mxu0 %v238
      %348 = vmatprep.subr.mxu0 0.0
      %349 = vmatpush1.msra.mxu0 %v239
      %350 = vmatprep.subr.mxu0 0.0
      %351 = vmatpush1.msra.mxu0 %v240
      %352 = vmatprep.subr.mxu0 0.0
      %353 = vmatpush1.msra.mxu0 %v241
      %354 = vmatprep.subr.mxu0 0.0
      %355 = vmatpush1.msra.mxu0 %v242
      %356 = vmatprep.subr.mxu0 0.0
      %357 = vmatpush1.msra.mxu0 %v243
      %358 = vmatprep.subr.mxu0 0.0
      %359 = vmatpush1.msra.mxu0 0.0
      %360 = vmatprep.subr.mxu0 0.0
      %361 = vmatpush1.msra.mxu0 0.0
      %362 = vmatprep.subr.mxu0 0.0
      %363 = vmatpush1.msra.mxu0 0.0
      %364 = vmatprep.subr.mxu0 0.0
      %365 = vmatpush1.msra.mxu0 0.0
      %366 = vmatprep.subr.mxu0 0.0
      %367 = vmatpush1.msra.mxu0 0.0
      %368 = vmatprep.subr.mxu0 0.0
      %369 = vmatpush1.msra.mxu0 0.0
      %370 = vmatprep.subr.mxu0 0.0
      %371 = vmatpush1.msra.mxu0 0.0
      %372 = vmatprep.subr.mxu0 0.0
      %373 = vmatpush1.msra.mxu0 0.0
      %374 = vmatprep.subr.mxu0 0.0
      %375 = vmatpush1.msra.mxu0 0.0
      %376 = vmatprep.subr.mxu0 0.0
      %377 = vmatpush1.msra.mxu0 0.0
      %378 = vmatprep.subr.mxu0 0.0
      %379 = vmatpush1.msra.mxu0 0.0
      %380 = vmatprep.subr.mxu0 0.0
      %381 = vmatpush1.msra.mxu0 0.0
      %382 = vmatprep.subr.mxu0 0.0
      %383 = vmatpush1.msra.mxu0 0.0
      %384 = vmatprep.subr.mxu0 0.0
      %385 = vmatpush1.msra.mxu0 0.0
      %386 = vmatprep.subr.mxu0 0.0
      %387 = vmatpush1.msra.mxu0 0.0
      %388 = vmatprep.subr.mxu0 0.0
      %389 = vmatpush1.msra.mxu0 0.0
      %390 = vmatprep.subr.mxu0 0.0
      %391 = vmatpush1.msra.mxu0 0.0
      %392 = vmatprep.subr.mxu0 0.0
      %393 = vmatpush1.msra.mxu0 0.0
      %394 = vmatprep.subr.mxu0 0.0
      %395 = vmatpush1.msra.mxu0 0.0
      %396 = vmatprep.subr.mxu0 0.0
      %397 = vmatpush1.msra.mxu0 0.0
      %398 = vmatprep.subr.mxu0 0.0
      %399 = vmatpush1.msra.mxu0 0.0
      %400 = vmatprep.subr.mxu0 0.0
      %401 = vmatpush1.msra.mxu0 0.0
      %402 = vmatprep.subr.mxu0 0.0
      %403 = vmatpush1.msra.mxu0 0.0
      %404 = vmatprep.subr.mxu0 0.0
      %405 = vmatpush1.msra.mxu0 0.0
      %406 = vmatprep.mubr.f32.mxu0 0.0
      %407 = vmatmul.mubr.f32.gmra.mrb[0].mxu0 %v337
      %v408 = vpop.f32.mrb[0].mxu0
      %v409 = vadd.f32 %v328, %v408
      %v410 = vpop.f32.mrb[0].mxu0
      %411 = vmatprep.mubr.f32.mxu0 0.0
      %412 = vmatmul.mubr.f32.gmra.mrb[0].mxu0 %v340
      %v413 = vpop.f32.mrb[0].mxu0
      %v414 = vadd.f32 %v333, %v413
      %v415 = vpop.f32.mrb[0].mxu0
      %416 = vdwg.mxu0
      %v417 = vld [vmem:[#allocation2 + $0x2] sm:$0xff]
      %v418 = vld [vmem:[#allocation2 + $0xa] sm:$0xff]
      %s419 = scalar_lea.vmem %s1, 128
      %v420 = vld [vmem:[%s419] sm:$0xff]
      %v421 = vld [vmem:[%s419 + $0x8] sm:$0xff]
      %v422 = vld [vmem:[%s419 + $0x10] sm:$0xff]
      %v423 = vld [vmem:[%s419 + $0x18] sm:$0xff]
      %v424 = vld [vmem:[%s419 + $0x20] sm:$0xff]
      %v425 = vld [vmem:[%s419 + $0x28] sm:$0xff]
      %v426 = vld [vmem:[%s419 + $0x30] sm:$0xff]
      %v427 = vld [vmem:[%s419 + $0x38] sm:$0xff]
      %v429 = vsel %vm225, %v417, 0
      %v432 = vsel %vm225, %v418, 0
      %434 = vmatprep.subr.mxu0 0.0
      %435 = vmatpush1.msra.mxu0 %v420
      %436 = vmatprep.subr.mxu0 0.0
      %437 = vmatpush1.msra.mxu0 %v421
      %438 = vmatprep.subr.mxu0 0.0
      %439 = vmatpush1.msra.mxu0 %v422
      %440 = vmatprep.subr.mxu0 0.0
      %441 = vmatpush1.msra.mxu0 %v423
      %442 = vmatprep.subr.mxu0 0.0
      %443 = vmatpush1.msra.mxu0 %v424
      %444 = vmatprep.subr.mxu0 0.0
      %445 = vmatpush1.msra.mxu0 %v425
      %446 = vmatprep.subr.mxu0 0.0
      %447 = vmatpush1.msra.mxu0 %v426
      %448 = vmatprep.subr.mxu0 0.0
      %449 = vmatpush1.msra.mxu0 %v427
      %450 = vmatprep.subr.mxu0 0.0
      %451 = vmatpush1.msra.mxu0 0.0
      %452 = vmatprep.subr.mxu0 0.0
      %453 = vmatpush1.msra.mxu0 0.0
      %454 = vmatprep.subr.mxu0 0.0
      %455 = vmatpush1.msra.mxu0 0.0
      %456 = vmatprep.subr.mxu0 0.0
      %457 = vmatpush1.msra.mxu0 0.0
      %458 = vmatprep.subr.mxu0 0.0
      %459 = vmatpush1.msra.mxu0 0.0
      %460 = vmatprep.subr.mxu0 0.0
      %461 = vmatpush1.msra.mxu0 0.0
      %462 = vmatprep.subr.mxu0 0.0
      %463 = vmatpush1.msra.mxu0 0.0
      %464 = vmatprep.subr.mxu0 0.0
      %465 = vmatpush1.msra.mxu0 0.0
      %466 = vmatprep.subr.mxu0 0.0
      %467 = vmatpush1.msra.mxu0 0.0
      %468 = vmatprep.subr.mxu0 0.0
      %469 = vmatpush1.msra.mxu0 0.0
      %470 = vmatprep.subr.mxu0 0.0
      %471 = vmatpush1.msra.mxu0 0.0
      %472 = vmatprep.subr.mxu0 0.0
      %473 = vmatpush1.msra.mxu0 0.0
      %474 = vmatprep.subr.mxu0 0.0
      %475 = vmatpush1.msra.mxu0 0.0
      %476 = vmatprep.subr.mxu0 0.0
      %477 = vmatpush1.msra.mxu0 0.0
      %478 = vmatprep.subr.mxu0 0.0
      %479 = vmatpush1.msra.mxu0 0.0
      %480 = vmatprep.subr.mxu0 0.0
      %481 = vmatpush1.msra.mxu0 0.0
      %482 = vmatprep.subr.mxu0 0.0
      %483 = vmatpush1.msra.mxu0 0.0
      %484 = vmatprep.subr.mxu0 0.0
      %485 = vmatpush1.msra.mxu0 0.0
      %486 = vmatprep.subr.mxu0 0.0
      %487 = vmatpush1.msra.mxu0 0.0
      %488 = vmatprep.subr.mxu0 0.0
      %489 = vmatpush1.msra.mxu0 0.0
      %490 = vmatprep.subr.mxu0 0.0
      %491 = vmatpush1.msra.mxu0 0.0
      %492 = vmatprep.subr.mxu0 0.0
      %493 = vmatpush1.msra.mxu0 0.0
      %494 = vmatprep.subr.mxu0 0.0
      %495 = vmatpush1.msra.mxu0 0.0
      %496 = vmatprep.subr.mxu0 0.0
      %497 = vmatpush1.msra.mxu0 0.0
      %498 = vmatprep.mubr.f32.mxu0 0.0
      %499 = vmatmul.mubr.f32.gmra.mrb[0].mxu0 %v429
      %v500 = vpop.f32.mrb[0].mxu0
      %v501 = vadd.f32 0.0, %v500
      %v502 = vpop.f32.mrb[0].mxu0
      %503 = vmatprep.mubr.f32.mxu0 0.0
      %504 = vmatmul.mubr.f32.gmra.mrb[0].mxu0 %v432
      %v505 = vpop.f32.mrb[0].mxu0
      %v506 = vadd.f32 0.0, %v505
      %v507 = vpop.f32.mrb[0].mxu0
      %508 = vdwg.mxu0
      %v509 = vadd.f32 %v409, %v501
      %v510 = vadd.f32 %v414, %v506
      %v511 = vld [vmem:[%s2] sm:$0x1]
      %v513 = vlaneseq
      %v514 = vshrl.u32 %v513, 7
      %v515 = vsub.s32 0, %v514
      %v516 = vrot.slane %v511, %v515
      %v518 = vadd.f32 %v509, %v516
      %v519 = vadd.f32 %v510, %v516
      %520 = vst.msk [vmem:[#allocation3] sm:$0xff] %vm225, 0.0
      %521 = vst.msk [vmem:[#allocation3 + $0x8] sm:$0xff] %vm225, 0.0
      %522 = vst.msk [vmem:[#allocation3 + $0x10] sm:$0x3] %vm228, 0.0
      %523 = vst.msk [vmem:[#allocation3 + $0x1] sm:$0xff] %vm225, %v518
      %524 = vst.msk [vmem:[#allocation3 + $0x9] sm:$0xff] %vm225, %v519
      %v525 = vld [vmem:[#allocation3] sm:$0xff]
      %v526 = vld [vmem:[#allocation3 + $0x8] sm:$0xff]
      %v527 = vld [vmem:[%s3] sm:$0xff]
      %v528 = vld [vmem:[%s3 + $0x8] sm:$0xff]
      %v529 = vld [vmem:[%s3 + $0x10] sm:$0xff]
      %v530 = vld [vmem:[%s3 + $0x18] sm:$0xff]
      %v531 = vld [vmem:[%s3 + $0x20] sm:$0xff]
      %v532 = vld [vmem:[%s3 + $0x28] sm:$0xff]
      %v533 = vld [vmem:[%s3 + $0x30] sm:$0xff]
      %v534 = vld [vmem:[%s3 + $0x38] sm:$0xff]
      %v535 = vld [vmem:[#allocation3 + $0x1] sm:$0xff]
      %v536 = vld [vmem:[#allocation3 + $0x9] sm:$0xff]
      %s537 = scalar_lea.vmem %s3, 64
      %v538 = vld [vmem:[%s537] sm:$0xff]
      %v539 = vld [vmem:[%s537 + $0x8] sm:$0xff]
      %v540 = vld [vmem:[%s537 + $0x10] sm:$0xff]
      %v541 = vld [vmem:[%s537 + $0x18] sm:$0xff]
      %v542 = vld [vmem:[%s537 + $0x20] sm:$0xff]
      %v543 = vld [vmem:[%s537 + $0x28] sm:$0xff]
      %v544 = vld [vmem:[%s537 + $0x30] sm:$0xff]
      %v545 = vld [vmem:[%s537 + $0x38] sm:$0xff]
      %v547 = vsel %vm225, %v535, 0
      %v550 = vsel %vm225, %v536, 0
      %552 = vmatprep.subr.mxu0 0.0
      %553 = vmatpush1.msra.mxu0 %v538
      %554 = vmatprep.subr.mxu0 0.0
      %555 = vmatpush1.msra.mxu0 %v539
      %556 = vmatprep.subr.mxu0 0.0
      %557 = vmatpush1.msra.mxu0 %v540
      %558 = vmatprep.subr.mxu0 0.0
      %559 = vmatpush1.msra.mxu0 %v541
      %560 = vmatprep.subr.mxu0 0.0
      %561 = vmatpush1.msra.mxu0 %v542
      %562 = vmatprep.subr.mxu0 0.0
      %563 = vmatpush1.msra.mxu0 %v543
      %564 = vmatprep.subr.mxu0 0.0
      %565 = vmatpush1.msra.mxu0 %v544
      %566 = vmatprep.subr.mxu0 0.0
      %567 = vmatpush1.msra.mxu0 %v545
      %568 = vmatprep.subr.mxu0 0.0
      %569 = vmatpush1.msra.mxu0 0.0
      %570 = vmatprep.subr.mxu0 0.0
      %571 = vmatpush1.msra.mxu0 0.0
      %572 = vmatprep.subr.mxu0 0.0
      %573 = vmatpush1.msra.mxu0 0.0
      %574 = vmatprep.subr.mxu0 0.0
      %575 = vmatpush1.msra.mxu0 0.0
      %576 = vmatprep.subr.mxu0 0.0
      %577 = vmatpush1.msra.mxu0 0.0
      %578 = vmatprep.subr.mxu0 0.0
      %579 = vmatpush1.msra.mxu0 0.0
      %580 = vmatprep.subr.mxu0 0.0
      %581 = vmatpush1.msra.mxu0 0.0
      %582 = vmatprep.subr.mxu0 0.0
      %583 = vmatpush1.msra.mxu0 0.0
      %584 = vmatprep.subr.mxu0 0.0
      %585 = vmatpush1.msra.mxu0 0.0
      %586 = vmatprep.subr.mxu0 0.0
      %587 = vmatpush1.msra.mxu0 0.0
      %588 = vmatprep.subr.mxu0 0.0
      %589 = vmatpush1.msra.mxu0 0.0
      %590 = vmatprep.subr.mxu0 0.0
      %591 = vmatpush1.msra.mxu0 0.0
      %592 = vmatprep.subr.mxu0 0.0
      %593 = vmatpush1.msra.mxu0 0.0
      %594 = vmatprep.subr.mxu0 0.0
      %595 = vmatpush1.msra.mxu0 0.0
      %596 = vmatprep.subr.mxu0 0.0
      %597 = vmatpush1.msra.mxu0 0.0
      %598 = vmatprep.subr.mxu0 0.0
      %599 = vmatpush1.msra.mxu0 0.0
      %600 = vmatprep.subr.mxu0 0.0
      %601 = vmatpush1.msra.mxu0 0.0
      %602 = vmatprep.subr.mxu0 0.0
      %603 = vmatpush1.msra.mxu0 0.0
      %604 = vmatprep.subr.mxu0 0.0
      %605 = vmatpush1.msra.mxu0 0.0
      %606 = vmatprep.subr.mxu0 0.0
      %607 = vmatpush1.msra.mxu0 0.0
      %608 = vmatprep.subr.mxu0 0.0
      %609 = vmatpush1.msra.mxu0 0.0
      %610 = vmatprep.subr.mxu0 0.0
      %611 = vmatpush1.msra.mxu0 0.0
      %612 = vmatprep.subr.mxu0 0.0
      %613 = vmatpush1.msra.mxu0 0.0
      %614 = vmatprep.subr.mxu0 0.0
      %615 = vmatpush1.msra.mxu0 0.0
      %616 = vmatprep.mubr.f32.mxu0 0.0
      %617 = vmatmul.mubr.f32.gmra.mrb[0].mxu0 %v547
      %v618 = vpop.f32.mrb[0].mxu0
      %v619 = vadd.f32 0.0, %v618
      %v620 = vpop.f32.mrb[0].mxu0
      %621 = vmatprep.mubr.f32.mxu0 0.0
      %622 = vmatmul.mubr.f32.gmra.mrb[0].mxu0 %v550
      %v623 = vpop.f32.mrb[0].mxu0
      %v624 = vadd.f32 0.0, %v623
      %v625 = vpop.f32.mrb[0].mxu0
      %626 = vdwg.mxu0
      %v628 = vsel %vm225, %v525, 0
      %v631 = vsel %vm225, %v526, 0
      %633 = vmatprep.subr.mxu0 0.0
      %634 = vmatpush1.msra.mxu0 %v527
      %635 = vmatprep.subr.mxu0 0.0
      %636 = vmatpush1.msra.mxu0 %v528
      %637 = vmatprep.subr.mxu0 0.0
      %638 = vmatpush1.msra.mxu0 %v529
      %639 = vmatprep.subr.mxu0 0.0
      %640 = vmatpush1.msra.mxu0 %v530
      %641 = vmatprep.subr.mxu0 0.0
      %642 = vmatpush1.msra.mxu0 %v531
      %643 = vmatprep.subr.mxu0 0.0
      %644 = vmatpush1.msra.mxu0 %v532
      %645 = vmatprep.subr.mxu0 0.0
      %646 = vmatpush1.msra.mxu0 %v533
      %647 = vmatprep.subr.mxu0 0.0
      %648 = vmatpush1.msra.mxu0 %v534
      %649 = vmatprep.subr.mxu0 0.0
      %650 = vmatpush1.msra.mxu0 0.0
      %651 = vmatprep.subr.mxu0 0.0
      %652 = vmatpush1.msra.mxu0 0.0
      %653 = vmatprep.subr.mxu0 0.0
      %654 = vmatpush1.msra.mxu0 0.0
      %655 = vmatprep.subr.mxu0 0.0
      %656 = vmatpush1.msra.mxu0 0.0
      %657 = vmatprep.subr.mxu0 0.0
      %658 = vmatpush1.msra.mxu0 0.0
      %659 = vmatprep.subr.mxu0 0.0
      %660 = vmatpush1.msra.mxu0 0.0
      %661 = vmatprep.subr.mxu0 0.0
      %662 = vmatpush1.msra.mxu0 0.0
      %663 = vmatprep.subr.mxu0 0.0
      %664 = vmatpush1.msra.mxu0 0.0
      %665 = vmatprep.subr.mxu0 0.0
      %666 = vmatpush1.msra.mxu0 0.0
      %667 = vmatprep.subr.mxu0 0.0
      %668 = vmatpush1.msra.mxu0 0.0
      %669 = vmatprep.subr.mxu0 0.0
      %670 = vmatpush1.msra.mxu0 0.0
      %671 = vmatprep.subr.mxu0 0.0
      %672 = vmatpush1.msra.mxu0 0.0
      %673 = vmatprep.subr.mxu0 0.0
      %674 = vmatpush1.msra.mxu0 0.0
      %675 = vmatprep.subr.mxu0 0.0
      %676 = vmatpush1.msra.mxu0 0.0
      %677 = vmatprep.subr.mxu0 0.0
      %678 = vmatpush1.msra.mxu0 0.0
      %679 = vmatprep.subr.mxu0 0.0
      %680 = vmatpush1.msra.mxu0 0.0
      %681 = vmatprep.subr.mxu0 0.0
      %682 = vmatpush1.msra.mxu0 0.0
      %683 = vmatprep.subr.mxu0 0.0
      %684 = vmatpush1.msra.mxu0 0.0
      %685 = vmatprep.subr.mxu0 0.0
      %686 = vmatpush1.msra.mxu0 0.0
      %687 = vmatprep.subr.mxu0 0.0
      %688 = vmatpush1.msra.mxu0 0.0
      %689 = vmatprep.subr.mxu0 0.0
      %690 = vmatpush1.msra.mxu0 0.0
      %691 = vmatprep.subr.mxu0 0.0
      %692 = vmatpush1.msra.mxu0 0.0
      %693 = vmatprep.subr.mxu0 0.0
      %694 = vmatpush1.msra.mxu0 0.0
      %695 = vmatprep.subr.mxu0 0.0
      %696 = vmatpush1.msra.mxu0 0.0
      %697 = vmatprep.mubr.f32.mxu0 0.0
      %698 = vmatmul.mubr.f32.gmra.mrb[0].mxu0 %v628
      %v699 = vpop.f32.mrb[0].mxu0
      %v700 = vadd.f32 %v619, %v699
      %v701 = vpop.f32.mrb[0].mxu0
      %702 = vmatprep.mubr.f32.mxu0 0.0
      %703 = vmatmul.mubr.f32.gmra.mrb[0].mxu0 %v631
      %v704 = vpop.f32.mrb[0].mxu0
      %v705 = vadd.f32 %v624, %v704
      %v706 = vpop.f32.mrb[0].mxu0
      %707 = vdwg.mxu0
      %v708 = vld [vmem:[#allocation3 + $0x2] sm:$0xff]
      %v709 = vld [vmem:[#allocation3 + $0xa] sm:$0xff]
      %s710 = scalar_lea.vmem %s3, 128
      %v711 = vld [vmem:[%s710] sm:$0xff]
      %v712 = vld [vmem:[%s710 + $0x8] sm:$0xff]
      %v713 = vld [vmem:[%s710 + $0x10] sm:$0xff]
      %v714 = vld [vmem:[%s710 + $0x18] sm:$0xff]
      %v715 = vld [vmem:[%s710 + $0x20] sm:$0xff]
      %v716 = vld [vmem:[%s710 + $0x28] sm:$0xff]
      %v717 = vld [vmem:[%s710 + $0x30] sm:$0xff]
      %v718 = vld [vmem:[%s710 + $0x38] sm:$0xff]
      %v720 = vsel %vm225, %v708, 0
      %v723 = vsel %vm225, %v709, 0
      %725 = vmatprep.subr.mxu0 0.0
      %726 = vmatpush1.msra.mxu0 %v711
      %727 = vmatprep.subr.mxu0 0.0
      %728 = vmatpush1.msra.mxu0 %v712
      %729 = vmatprep.subr.mxu0 0.0
      %730 = vmatpush1.msra.mxu0 %v713
      %731 = vmatprep.subr.mxu0 0.0
      %732 = vmatpush1.msra.mxu0 %v714
      %733 = vmatprep.subr.mxu0 0.0
      %734 = vmatpush1.msra.mxu0 %v715
      %735 = vmatprep.subr.mxu0 0.0
      %736 = vmatpush1.msra.mxu0 %v716
      %737 = vmatprep.subr.mxu0 0.0
      %738 = vmatpush1.msra.mxu0 %v717
      %739 = vmatprep.subr.mxu0 0.0
      %740 = vmatpush1.msra.mxu0 %v718
      %741 = vmatprep.subr.mxu0 0.0
      %742 = vmatpush1.msra.mxu0 0.0
      %743 = vmatprep.subr.mxu0 0.0
      %744 = vmatpush1.msra.mxu0 0.0
      %745 = vmatprep.subr.mxu0 0.0
      %746 = vmatpush1.msra.mxu0 0.0
      %747 = vmatprep.subr.mxu0 0.0
      %748 = vmatpush1.msra.mxu0 0.0
      %749 = vmatprep.subr.mxu0 0.0
      %750 = vmatpush1.msra.mxu0 0.0
      %751 = vmatprep.subr.mxu0 0.0
      %752 = vmatpush1.msra.mxu0 0.0
      %753 = vmatprep.subr.mxu0 0.0
      %754 = vmatpush1.msra.mxu0 0.0
      %755 = vmatprep.subr.mxu0 0.0
      %756 = vmatpush1.msra.mxu0 0.0
      %757 = vmatprep.subr.mxu0 0.0
      %758 = vmatpush1.msra.mxu0 0.0
      %759 = vmatprep.subr.mxu0 0.0
      %760 = vmatpush1.msra.mxu0 0.0
      %761 = vmatprep.subr.mxu0 0.0
      %762 = vmatpush1.msra.mxu0 0.0
      %763 = vmatprep.subr.mxu0 0.0
      %764 = vmatpush1.msra.mxu0 0.0
      %765 = vmatprep.subr.mxu0 0.0
      %766 = vmatpush1.msra.mxu0 0.0
      %767 = vmatprep.subr.mxu0 0.0
      %768 = vmatpush1.msra.mxu0 0.0
      %769 = vmatprep.subr.mxu0 0.0
      %770 = vmatpush1.msra.mxu0 0.0
      %771 = vmatprep.subr.mxu0 0.0
      %772 = vmatpush1.msra.mxu0 0.0
      %773 = vmatprep.subr.mxu0 0.0
      %774 = vmatpush1.msra.mxu0 0.0
      %775 = vmatprep.subr.mxu0 0.0
      %776 = vmatpush1.msra.mxu0 0.0
      %777 = vmatprep.subr.mxu0 0.0
      %778 = vmatpush1.msra.mxu0 0.0
      %779 = vmatprep.subr.mxu0 0.0
      %780 = vmatpush1.msra.mxu0 0.0
      %781 = vmatprep.subr.mxu0 0.0
      %782 = vmatpush1.msra.mxu0 0.0
      %783 = vmatprep.subr.mxu0 0.0
      %784 = vmatpush1.msra.mxu0 0.0
      %785 = vmatprep.subr.mxu0 0.0
      %786 = vmatpush1.msra.mxu0 0.0
      %787 = vmatprep.subr.mxu0 0.0
      %788 = vmatpush1.msra.mxu0 0.0
      %789 = vmatprep.mubr.f32.mxu0 0.0
      %790 = vmatmul.mubr.f32.gmra.mrb[0].mxu0 %v720
      %v791 = vpop.f32.mrb[0].mxu0
      %v792 = vadd.f32 0.0, %v791
      %v793 = vpop.f32.mrb[0].mxu0
      %794 = vmatprep.mubr.f32.mxu0 0.0
      %795 = vmatmul.mubr.f32.gmra.mrb[0].mxu0 %v723
      %v796 = vpop.f32.mrb[0].mxu0
      %v797 = vadd.f32 0.0, %v796
      %v798 = vpop.f32.mrb[0].mxu0
      %799 = vdwg.mxu0
      %v800 = vadd.f32 %v700, %v792
      %v801 = vadd.f32 %v705, %v797
      %v802 = vld [vmem:[%s4] sm:$0x1]
      %v804 = vlaneseq
      %v805 = vshrl.u32 %v804, 7
      %v806 = vsub.s32 0, %v805
      %v807 = vrot.slane %v802, %v806
      %v809 = vadd.f32 %v800, %v807
      %v810 = vadd.f32 %v801, %v807
      %v811 = vld [vmem:[%s219] sm:$0xff]
      %v812 = vld [vmem:[%s219 + $0x8] sm:$0xff]
      %v813 = vmax.f32 %v809, 0.0
      %v814 = vmax.f32 %v810, 0.0
      %v815 = vadd.f32 %v811, %v813
      %v816 = vadd.f32 %v812, %v814
      %817 = vst.msk [vmem:[%s224] sm:$0xff] %vm225, %v815
      %818 = vst.msk [vmem:[%s224 + $0x8] sm:$0xff] %vm225, %v816
      %p819 = scmp.lt.s32.totalorder %s16, 1
      %s820 = scalar_select %p819, %s16, 1
      %s821 = smul.addr %s820, 2
      %s822 = smul.addr %s821, 8
      %s823 = scalar_lea.vmem %s5, %s822
      // Predicated region
      $region41: #{conv_residual_block_pallas.1} parent=39 // pred_check
        %p824 = pneg %p144
      $region42: #{conv_residual_block_pallas.1} parent=39 // pred_check_branch
        %826 = sbr.rel (%p824) target = $region44
      $region43: #{conv_residual_block_pallas.1} parent=39 // pred_region
        _
      $region44: #{conv_residual_block_pallas.1} parent=39 // pred_fallthru
        _
    $region40: #{conv_residual_block_pallas.1} parent=5 // pred_fallthru
      _
    %p827 = scmp.le.s32.totalorder 2, %s11
    // Predicated region
    $region45: #{conv_residual_block_pallas.1} parent=5 // pred_check
      %p828 = pneg %p827
    $region46: #{conv_residual_block_pallas.1} parent=5 // pred_check_branch
      %830 = sbr.rel (%p828) target = $region48
    $region47: #{conv_residual_block_pallas.1} parent=5 // pred_region
      %s831 = ssub.s32 %s11, 2
      // Predicated region
      $region49: #{conv_residual_block_pallas.1} parent=47 // pred_check
        %p832 = pneg %p150
      $region50: #{conv_residual_block_pallas.1} parent=47 // pred_check_branch
        %834 = sbr.rel (%p832) target = $region52
      $region51: #{conv_residual_block_pallas.1} parent=47 // pred_region
        %p835 = scmp.lt.s32.totalorder %s17, 1
        %s836 = scalar_select %p835, %s17, 1
        %s837 = smul.addr %s836, 2
        %s838 = smul.addr %s837, 8
        %s839 = scalar_lea.vmem %s5, %s838
      $region52: #{conv_residual_block_pallas.1} parent=47 // pred_fallthru
        _
    $region48: #{conv_residual_block_pallas.1} parent=5 // pred_fallthru
      _
  $region6: #{conv_residual_block_pallas.1} parent=0 // loop_footer
    %s15 = sadd.s32 1, %s11
  $region7: #{conv_residual_block_pallas.1} parent=0 // loop_footer_branch
    %10 = sbr.rel target = $region3
  $region8: #{conv_residual_block_pallas.1} parent=0 // loop_exit
    _

</llo_original>
